<compile_context>
chip_gen: v7x
topology: tpu7x:2x2x1
jax: 0.10.0
libtpu: 0.0.40
codegen_flags: <defaults>
</compile_context>

<pallas_src>
import functools

import jax
import jax.numpy as jnp
from jax.experimental import pallas as pl
from jax.experimental.pallas import tpu as pltpu


def _per_sample_loss(x0_ref, x1_ref, y_ref, *, margin):
    """Shared hot path: per-row contrastive loss for one (TB, D) tile."""
    x0 = x0_ref[...].astype(jnp.float32)                    # in-kernel upcast
    x1 = x1_ref[...].astype(jnp.float32)
    diff = x0 - x1                                          # (TB, D)
    sq_dist = jnp.sum(diff * diff, axis=1, keepdims=True)   # (TB, 1) == dist**2
    dist = jnp.sqrt(sq_dist)                                # (TB, 1)
    y = y_ref[...].astype(jnp.float32)                      # (TB, 1)
    mdist = jnp.maximum(margin - dist, 0.0)                 # clamp(margin - dist, 0)
    return (1.0 - y) * sq_dist + y * (mdist * mdist)        # (TB, 1)


def _contrastive_kernel_reduce(x0_ref, x1_ref, y_ref, out_ref, acc_ref, *,
                               margin, scale, bs, tb):
    """'elementwise_mean' / 'sum': accumulate per-tile, finalize once."""
    i = pl.program_id(0)

    @pl.when(i == 0)
    def _init():
        acc_ref[...] = jnp.zeros_like(acc_ref)

    loss = _per_sample_loss(x0_ref, x1_ref, y_ref, margin=margin)   # (TB, 1)

    # Mask padded rows of the last (possibly partial) batch tile.
    row = i * tb + jax.lax.broadcasted_iota(jnp.int32, (tb, 1), 0)
    loss = jnp.where(row < bs, loss, 0.0)

    acc_ref[...] += loss

    @pl.when(i == pl.num_programs(0) - 1)
    def _finalize():
        out_ref[...] = jnp.sum(acc_ref[...], axis=0, keepdims=True) * scale


def _contrastive_kernel_none(x0_ref, x1_ref, y_ref, out_ref, *, margin):
    """reduction='none': per-sample loss, independent per tile."""
    out_ref[...] = _per_sample_loss(x0_ref, x1_ref, y_ref, margin=margin)


def _choose_batch_tile(bs, d, itemsize):
    """~2 MiB per input block (=> ~8 MiB with 2 inputs x 2 buffers): big enough
    for ~85% of HBM roofline, small enough for every generation's scoped VMEM
    (16 MiB v5e default, 32 MiB v6e/v7x default, 64 MiB v7x physical)."""
    align = max(8, 32 // max(1, itemsize))          # 8 rows f32, 16 bf16, 32 int8
    target_bytes = 2 * 1024 * 1024
    tb = target_bytes // max(1, d * itemsize)
    tb = int(max(align, min(tb, 1024)))
    tb = max(align, (tb // align) * align)
    if tb >= bs:
        return bs                                   # single block == full batch dim
    return tb


def contrastive_embedding_loss(x0, x1, y, *, margin=1.0,
                               reduction="elementwise_mean"):
    """JAX/Pallas equivalent of catalyst ContrastiveEmbeddingLoss.forward."""
    assert x0.shape == x1.shape and x0.ndim == 2
    bs, d = x0.shape

    y2d = y.reshape(bs, 1)
    if not jnp.issubdtype(y2d.dtype, jnp.floating):
        y2d = y2d.astype(jnp.float32)

    tb = _choose_batch_tile(bs, d, jnp.dtype(x0.dtype).itemsize)
    grid = (pl.cdiv(bs, tb),)

    in_specs = [
        pl.BlockSpec((tb, d), lambda i: (i, 0)),
        pl.BlockSpec((tb, d), lambda i: (i, 0)),
        pl.BlockSpec((tb, 1), lambda i: (i, 0)),
    ]

    if reduction in ("elementwise_mean", "sum"):
        scale = 0.5 / bs if reduction == "elementwise_mean" else 1.0
        kernel = functools.partial(
            _contrastive_kernel_reduce,
            margin=float(margin), scale=float(scale), bs=bs, tb=tb)
        out = pl.pallas_call(
            kernel,
            out_shape=jax.ShapeDtypeStruct((1, 1), jnp.float32),
            grid_spec=pltpu.PrefetchScalarGridSpec(
                num_scalar_prefetch=0,
                grid=grid,
                in_specs=in_specs,
                out_specs=pl.BlockSpec((1, 1), lambda i: (0, 0)),
                scratch_shapes=[pltpu.VMEM((tb, 1), jnp.float32)],
            ),
            compiler_params=pltpu.CompilerParams(
                dimension_semantics=("arbitrary",),   # carries the accumulator
                vmem_limit_bytes=32 * 1024 * 1024,
            ),
        )(x0, x1, y2d)
        return out[0, 0]

    # reduction == 'none' (or falsy): per-sample loss.
    # TODO(synk): output kept as (TB, 1) column blocks (not lane-dense) to avoid
    # an in-kernel sublane->lane relayout; output bytes are <=1/D of input traffic.
    kernel = functools.partial(_contrastive_kernel_none, margin=float(margin))
    out = pl.pallas_call(
        kernel,
        out_shape=jax.ShapeDtypeStruct((bs, 1), jnp.float32),
        grid_spec=pltpu.PrefetchScalarGridSpec(
            num_scalar_prefetch=0,
            grid=grid,
            in_specs=in_specs,
            out_specs=pl.BlockSpec((tb, 1), lambda i: (i, 0)),
        ),
        compiler_params=pltpu.CompilerParams(
            dimension_semantics=("parallel",),        # independent tiles
            vmem_limit_bytes=32 * 1024 * 1024,
        ),
    )(x0, x1, y2d)
    return out[:, 0]


def _reference(x0, x1, y, margin=1.0, reduction="elementwise_mean"):
    diff = x0 - x1
    dist = jnp.sqrt(jnp.sum(diff * diff, axis=1))
    mdist = jnp.maximum(margin - dist, 0.0)
    loss = (1.0 - y) * dist * dist + y * mdist * mdist
    if reduction == "elementwise_mean":
        return jnp.sum(loss) / 2.0 / x0.shape[0]
    if reduction == "sum":
        return jnp.sum(loss)
    return loss


if __name__ == "__main__":
    key = jax.random.PRNGKey(0)
    k0, k1, ky = jax.random.split(key, 3)

    B, D = 8, 32  # batch of embedding pairs, hidden=32
    x0 = jax.random.normal(k0, (B, D), dtype=jnp.float32)
    x1 = jax.random.normal(k1, (B, D), dtype=jnp.float32)
    y = jax.random.bernoulli(ky, 0.5, (B,)).astype(jnp.float32)

    # f32 inputs, all reduction modes.
    for reduction in ("elementwise_mean", "sum", "none"):
        out = jax.block_until_ready(
            contrastive_embedding_loss(x0, x1, y, margin=1.0, reduction=reduction))
        ref = _reference(x0, x1, y, margin=1.0, reduction=reduction)
        assert jnp.allclose(out, ref, rtol=1e-5, atol=1e-5), (reduction, out, ref)

    # bf16 inputs stay bf16 on the wire; the kernel upcasts to f32 internally.
    x0b, x1b = x0.astype(jnp.bfloat16), x1.astype(jnp.bfloat16)
    out = jax.block_until_ready(
        contrastive_embedding_loss(x0b, x1b, y, margin=1.0,
                                   reduction="elementwise_mean"))
    ref = _reference(x0b.astype(jnp.float32), x1b.astype(jnp.float32), y,
                     margin=1.0, reduction="elementwise_mean")
    assert jnp.allclose(out, ref, rtol=1e-4, atol=1e-4), (out, ref)

    print("KERNEL_OK")
</pallas_src>

<mosaic_0001>
module attributes {stable_mosaic.version = 11 : i64} {
  func.func @_contrastive_kernel_reduce(%arg0: i32, %arg1: memref<8x32xf32, #tpu.memory_space<vmem>>, %arg2: memref<8x32xf32, #tpu.memory_space<vmem>>, %arg3: memref<8x1xf32, #tpu.memory_space<vmem>>, %arg4: memref<1x1xf32, #tpu.memory_space<vmem>>, %arg5: memref<8x1xf32, #tpu.memory_space<vmem>>) attributes {dimension_semantics = [#tpu.dimension_semantics<arbitrary>], iteration_bounds = array<i64: 1>, scalar_prefetch = 0 : i64, scratch_operands = 1 : i64, tpu.core_type = #tpu.core_type<tc>, window_params = [{transform_indices = @transform_0, window_bounds = array<i64: 8, 32>}, {transform_indices = @transform_1, window_bounds = array<i64: 8, 32>}, {transform_indices = @transform_2, window_bounds = array<i64: 8, 1>}, {pipeline_mode = #tpu.pipeline_mode<synchronous>, transform_indices = @transform_3, window_bounds = array<i64: 1, 1>}]} {
    %c0_i32 = arith.constant 0 : i32
    %0 = arith.cmpi eq, %arg0, %c0_i32 : i32
    %1 = arith.extui %0 : i1 to i32
    %c0_i32_0 = arith.constant 0 : i32
    %2 = arith.cmpi ne, %1, %c0_i32_0 : i32
    scf.if %2 {
      %cst_17 = arith.constant 0.000000e+00 : f32
      %35 = vector.broadcast %cst_17 : f32 to vector<8x1xf32>
      %c0_18 = arith.constant 0 : index
      %c0_19 = arith.constant 0 : index
      %36 = vector.load %arg5[%c0_18, %c0_19] : memref<8x1xf32, #tpu.memory_space<vmem>>, vector<8x1xf32>
      tpu.vector_store %arg5[%c0_18, %c0_19], %35 {strides = array<i32>} : memref<8x1xf32, #tpu.memory_space<vmem>>, vector<8x1xf32>,
    } else {
    }
    %c0 = arith.constant 0 : index
    %c0_1 = arith.constant 0 : index
    %3 = vector.load %arg1[%c0, %c0_1] : memref<8x32xf32, #tpu.memory_space<vmem>>, vector<8x32xf32>
    %c0_2 = arith.constant 0 : index
    %c0_3 = arith.constant 0 : index
    %4 = vector.load %arg2[%c0_2, %c0_3] : memref<8x32xf32, #tpu.memory_space<vmem>>, vector<8x32xf32>
    %5 = arith.subf %3, %4 : vector<8x32xf32>
    %6 = arith.mulf %5, %5 : vector<8x32xf32>
    %cst = arith.constant dense<0.000000e+00> : vector<8xf32>
    %7 = vector.multi_reduction <add>, %6, %cst [1] : vector<8x32xf32> to vector<8xf32>
    %8 = vector.shape_cast %7 : vector<8xf32> to vector<8x1xf32>
    %9 = math.sqrt %8 : vector<8x1xf32>
    %c0_4 = arith.constant 0 : index
    %c0_5 = arith.constant 0 : index
    %10 = vector.load %arg3[%c0_4, %c0_5] : memref<8x1xf32, #tpu.memory_space<vmem>>, vector<8x1xf32>
    %cst_6 = arith.constant 1.000000e+00 : f32
    %11 = vector.broadcast %cst_6 : f32 to vector<8x1xf32>
    %12 = arith.subf %11, %9 : vector<8x1xf32>
    %cst_7 = arith.constant 0.000000e+00 : f32
    %13 = vector.broadcast %cst_7 : f32 to vector<8x1xf32>
    %14 = arith.maximumf %12, %13 : vector<8x1xf32>
    %cst_8 = arith.constant 1.000000e+00 : f32
    %15 = vector.broadcast %cst_8 : f32 to vector<8x1xf32>
    %16 = arith.subf %15, %10 : vector<8x1xf32>
    %17 = arith.mulf %16, %8 : vector<8x1xf32>
    %18 = arith.mulf %14, %14 : vector<8x1xf32>
    %19 = arith.mulf %10, %18 : vector<8x1xf32>
    %20 = arith.addf %17, %19 : vector<8x1xf32>
    %c8_i32 = arith.constant 8 : i32
    %21 = arith.muli %arg0, %c8_i32 : i32
    %22 = tpu.iota {dimensions = array<i32: 0>} : vector<8x1xi32>
    %23 = vector.broadcast %21 : i32 to vector<8x1xi32>
    %24 = arith.addi %23, %22 : vector<8x1xi32>
    %c8_i32_9 = arith.constant 8 : i32
    %25 = vector.broadcast %c8_i32_9 : i32 to vector<8x1xi32>
    %26 = arith.cmpi slt, %24, %25 : vector<8x1xi32>
    %cst_10 = arith.constant 0.000000e+00 : f32
    %27 = vector.broadcast %cst_10 : f32 to vector<8x1xf32>
    %28 = arith.select %26, %20, %27 : vector<8x1xi1>, vector<8x1xf32>
    %c0_11 = arith.constant 0 : index
    %c0_12 = arith.constant 0 : index
    %29 = vector.load %arg5[%c0_11, %c0_12] : memref<8x1xf32, #tpu.memory_space<vmem>>, vector<8x1xf32>
    %30 = arith.addf %29, %28 : vector<8x1xf32>
    %c0_13 = arith.constant 0 : index
    %c0_14 = arith.constant 0 : index
    %31 = vector.load %arg5[%c0_13, %c0_14] : memref<8x1xf32, #tpu.memory_space<vmem>>, vector<8x1xf32>
    tpu.vector_store %arg5[%c0_13, %c0_14], %30 {strides = array<i32>} : memref<8x1xf32, #tpu.memory_space<vmem>>, vector<8x1xf32>,
    %c0_i32_15 = arith.constant 0 : i32
    %32 = arith.cmpi eq, %arg0, %c0_i32_15 : i32
    %33 = arith.extui %32 : i1 to i32
    %c0_i32_16 = arith.constant 0 : i32
    %34 = arith.cmpi ne, %33, %c0_i32_16 : i32
    scf.if %34 {
      %c0_17 = arith.constant 0 : index
      %c0_18 = arith.constant 0 : index
      %35 = vector.load %arg5[%c0_17, %c0_18] : memref<8x1xf32, #tpu.memory_space<vmem>>, vector<8x1xf32>
      %cst_19 = arith.constant dense<0.000000e+00> : vector<1xf32>
      %36 = vector.multi_reduction <add>, %35, %cst_19 [0] : vector<8x1xf32> to vector<1xf32>
      %37 = vector.shape_cast %36 : vector<1xf32> to vector<1x1xf32>
      %cst_20 = arith.constant 6.250000e-02 : f32
      %38 = vector.broadcast %cst_20 : f32 to vector<1x1xf32>
      %39 = arith.mulf %37, %38 : vector<1x1xf32>
      %c0_21 = arith.constant 0 : index
      %c0_22 = arith.constant 0 : index
      %40 = vector.load %arg4[%c0_21, %c0_22] : memref<1x1xf32, #tpu.memory_space<vmem>>, vector<1x1xf32>
      tpu.vector_store %arg4[%c0_21, %c0_22], %39 {strides = array<i32>} : memref<1x1xf32, #tpu.memory_space<vmem>>, vector<1x1xf32>,
    } else {
    }
    return
  }
  func.func @transform_0(%arg0: i32) -> (i32, i32) {
    %c0_i32 = arith.constant 0 : i32
    %c0_i32_0 = arith.constant 0 : i32
    return %arg0, %c0_i32 : i32, i32
  }
  func.func @transform_1(%arg0: i32) -> (i32, i32) {
    %c0_i32 = arith.constant 0 : i32
    %c0_i32_0 = arith.constant 0 : i32
    return %arg0, %c0_i32 : i32, i32
  }
  func.func @transform_2(%arg0: i32) -> (i32, i32) {
    %c0_i32 = arith.constant 0 : i32
    %c0_i32_0 = arith.constant 0 : i32
    return %arg0, %c0_i32 : i32, i32
  }
  func.func @transform_3(%arg0: i32) -> (i32, i32) {
    %c0_i32 = arith.constant 0 : i32
    %c0_i32_0 = arith.constant 0 : i32
    %c0_i32_1 = arith.constant 0 : i32
    return %c0_i32, %c0_i32_0 : i32, i32
  }
}

</mosaic_0001>

<llo_original>
// kernel: tpu_custom_call.1
$region0: #{tpu_custom_call.1}
  #allocation0 [shape = 'u32[]', space=smem, size = 0x4, offset = 0x4, fixed_abs, tag = 'smem constant byte address 0x4 - core index']
  #allocation1 [shape = 'u32[144,128]{1,0:T(1,128)}', space=vmem, size = 0x12000, scoped, tag = 'internal scratch']
  #allocation2 [shape = 'f32[8,1]{1,0:T(8,128)}', space=vmem, size = 0x1000, scoped, tag = 'scratch operand']
  %s0 = inlined_call_operand.vmem [shape: f32[8,32], index: 0, kind: input, shape index: {}]
  %s1 = inlined_call_operand.hbm [shape: f32[8,32], index: 1, kind: input, shape index: {}]
  %s2 = inlined_call_operand.vmem [shape: f32[8,1], index: 2, kind: input, shape index: {}]
  %s3 = inlined_call_operand.hbm [shape: f32[1,1], index: 3, kind: output, shape index: {}]
  %s4 = sld [smem:[#allocation0]]
  $region34: #{tpu_custom_call.1} parent=0
    _
  %s6 = ssub.s32 1, %s4
  %s7 = scalar_select 0, %s6, %s4
  $region1: #{tpu_custom_call.1} parent=0
    #allocation3 [shape = 'u8[4096]{0}', space=vmem, size = 0x1000, scoped, tag = 'input window, operand 1, single buffered']
    #allocation4 [shape = 's32[1]{0}', space=sflag, size = 0x4, scoped, tag = 'scoped memory for tpu_custom_call.1']
    #allocation5 [shape = 's32[1]{0}', space=sflag, size = 0x4, scoped, tag = 'scoped memory for tpu_custom_call.1']
    #allocation6 [shape = 'u8[512]{0}', space=vmem, size = 0x400, scoped, tag = 'output window, operand 0, single buffered']
    %8 = vsyncpa [#allocation4], 0
    %9 = vsyncpa [#allocation5], 0
    // Predicated region
    $region2: #{tpu_custom_call.1} parent=1 // pred_check
      _
    $region3: #{tpu_custom_call.1} parent=1 // pred_check_branch
      %11 = sbr.rel (0) target = $region5
    $region4: #{tpu_custom_call.1} parent=1 // pred_region
      _
    $region5: #{tpu_custom_call.1} parent=1 // pred_fallthru
      _
    // Predicated region
    $region6: #{tpu_custom_call.1} parent=1 // pred_check
      _
    $region7: #{tpu_custom_call.1} parent=1 // pred_check_branch
      %13 = sbr.rel (0) target = $region9
    $region8: #{tpu_custom_call.1} parent=1 // pred_region
      %s15 = ssub.s32 128, 128
      %16 = vsyncadd [#allocation4], %s15
      %s18 = sshll.u32 [#allocation3], 4
      %s19 = int_to_ptr.vmem [resolvable:$true] %s18
      %21 = dma.hbm_to_vmem [thread:$0]  %s1, 128, %s19, [#allocation4]
    $region9: #{tpu_custom_call.1} parent=1 // pred_fallthru
      _
    // Predicated region
    $region10: #{tpu_custom_call.1} parent=1 // pred_check
      _
    $region11: #{tpu_custom_call.1} parent=1 // pred_check_branch
      %23 = sbr.rel (0) target = $region13
    $region12: #{tpu_custom_call.1} parent=1 // pred_region
      _
    $region13: #{tpu_custom_call.1} parent=1 // pred_fallthru
      _
    // Predicated region
    $region14: #{tpu_custom_call.1} parent=1 // pred_check
      _
    $region15: #{tpu_custom_call.1} parent=1 // pred_check_branch
      %25 = sbr.rel (0) target = $region17
    $region16: #{tpu_custom_call.1} parent=1 // pred_region
      %26 = dma.done [#allocation4], 128
    $region17: #{tpu_custom_call.1} parent=1 // pred_fallthru
      _
    %p27 = scmp.eq.s32.totalorder 0, 0
    // Predicated region
    $region18: #{tpu_custom_call.1} parent=1 // pred_check
      %p28 = pneg %p27
    $region19: #{tpu_custom_call.1} parent=1 // pred_check_branch
      %30 = sbr.rel (%p28) target = $region21
    $region20: #{tpu_custom_call.1} parent=1 // pred_region
      %vm31 = vcmask 7168
      %32 = vst.msk [vmem:[#allocation2] sm:$0xff] %vm31, 0.0
    $region21: #{tpu_custom_call.1} parent=1 // pred_fallthru
      _
    %v33 = vld [vmem:[%s0] sm:$0xff]
    %v34 = vld [vmem:[#allocation3] sm:$0xff]
    %v35 = vsub.f32 %v33, %v34
    %v36 = vmul.f32 %v35, %v35
    %vm37 = vcmask 261120
    %v38 = vsel %vm37, %v36, 0.0
    %39 = vadd.xlane.f32.xlu0 %v38
    %v40 = vpop.xlane.xlu0 %39
    %v41 = vrsqrt.pop %v40
    %v42 = vmul.f32 %v40, %v41
    %vm43 = vcmp.eq.f32.partialorder %v40, inf
    %v44 = vsel %vm43, %v40, %v42
    %vm45 = vcmp.eq.f32.partialorder %v40, 0.0
    %v46 = vand.u32 %v40, 2147483648
    %v47 = vsel %vm45, %v46, %v44
    %v48 = vld [vmem:[%s2] sm:$0xff]
    %v49 = vsub.f32 1.0, %v47
    %v50 = vmax.f32 %v49, 0.0
    %v51 = vsub.f32 1.0, %v48
    %v52 = vmul.f32 %v51, %v40
    %v53 = vmul.f32 %v50, %v50
    %v54 = vmul.f32 %v48, %v53
    %v55 = vadd.f32 %v52, %v54
    %s56 = smul.u32 0, 8
    %v57 = vlaneseq
    %v58 = vshrl.u32 %v57, 7
    %v59 = vstv %s56
    %v60 = vadd.s32 %v59, %v58
    %vm61 = vcmp.lt.s32.totalorder %v60, 8
    %v62 = vsel %vm61, %v55, 0.0
    %v63 = vld [vmem:[#allocation2] sm:$0xff]
    %v64 = vadd.f32 %v63, %v62
    %vm65 = vcmask 7168
    %66 = vst.msk [vmem:[#allocation2] sm:$0xff] %vm65, %v64
    // Predicated region
    $region22: #{tpu_custom_call.1} parent=1 // pred_check
      %p67 = pneg %p27
    $region23: #{tpu_custom_call.1} parent=1 // pred_check_branch
      %69 = sbr.rel (%p67) target = $region25
    $region24: #{tpu_custom_call.1} parent=1 // pred_region
      %v70 = vld [vmem:[#allocation2] sm:$0xff]
      %v71 = vsel %vm65, %v70, 0.0
      %v72 = vrot.slane %v71, 4
      %v73 = vadd.f32 %v71, %v72
      %v74 = vrot.slane %v73, 2
      %v75 = vadd.f32 %v73, %v74
      %v76 = vrot.slane %v75, 1
      %v77 = vadd.f32 %v75, %v76
      %v78 = vmul.f32 %v77, 0.0625
      %vm79 = vcmask 0
      %80 = vst.msk [vmem:[#allocation6] sm:$0x1] %vm79, %v78
    $region25: #{tpu_custom_call.1} parent=1 // pred_fallthru
      _
    // Predicated region
    $region26: #{tpu_custom_call.1} parent=1 // pred_check
      _
    $region27: #{tpu_custom_call.1} parent=1 // pred_check_branch
      %82 = sbr.rel (0) target = $region29
    $region28: #{tpu_custom_call.1} parent=1 // pred_region
      %s84 = ssub.s32 16, 16
      %85 = vsyncadd [#allocation5], %s84
      %s87 = sshll.u32 [#allocation6], 4
      %s88 = int_to_ptr.vmem [resolvable:$true] %s87
      %90 = dma.vmem_to_hbm [thread:$0]  %s88, 16, %s3, [#allocation5]
    $region29: #{tpu_custom_call.1} parent=1 // pred_fallthru
      _
    // Predicated region
    $region30: #{tpu_custom_call.1} parent=1 // pred_check
      _
    $region31: #{tpu_custom_call.1} parent=1 // pred_check_branch
      %92 = sbr.rel (0) target = $region33
    $region32: #{tpu_custom_call.1} parent=1 // pred_region
      %93 = dma.done [#allocation5], 16
    $region33: #{tpu_custom_call.1} parent=1 // pred_fallthru
      _
    %94 = vsyncpa [#allocation4], 1
    %95 = vsyncpa [#allocation5], 1

</llo_original>
